<compile_context>
chip_gen: v6e
topology: v6e:2x2x1
jax: 0.10.0
libtpu: 0.0.40
codegen_flags: <defaults>
</compile_context>

<pallas_src>
import functools

import jax
import jax.numpy as jnp
import numpy as np
from jax import lax
from jax.experimental import pallas as pl
from jax.experimental.pallas import tpu as pltpu


VMEM_LIMIT_BYTES = 48 * 1024 * 1024   # > v5e(16MiB)/v6e(32MiB) defaults, < v7x 64MiB physical


def _cparams(dims):
    return pltpu.CompilerParams(dimension_semantics=dims,
                                vmem_limit_bytes=VMEM_LIMIT_BYTES)


# ----------------------------------------------------------------------------
# Kernel 1: fused fwd+bwd input projection, row-tiled over R = T*N rows.
#   gates[r, :] = b_cat + sum_k x_k[r, :] @ Wcat_k        (Wcat = [Wih_f | Wih_b])
# x_k are the fwd/bwd halves of the previous layer's output (no HBM concat).
# ----------------------------------------------------------------------------
def proj_kernel(n_parts, *refs):
    xs = refs[:n_parts]
    ws = refs[n_parts:2 * n_parts]
    b_ref, g_ref = refs[2 * n_parts:]

    acc = b_ref[...]                               # (1, 8H) f32, broadcasts
    for x_ref, w_ref in zip(xs, ws):
        acc = acc + jnp.dot(x_ref[...], w_ref[...],
                            preferred_element_type=jnp.float32)
    g_ref[...] = acc.astype(g_ref.dtype)


def input_projection(x_parts, w_parts, b_cat, gate_dtype, *, block_rows=512):
    R = x_parts[0].shape[0]
    G = w_parts[0].shape[1]                        # 8H
    TR = min(block_rows, R)
    grid = (pl.cdiv(R, TR),)
    n_parts = len(x_parts)

    in_specs = []
    for xp in x_parts:
        in_specs.append(pl.BlockSpec((TR, xp.shape[1]), lambda i: (i, 0)))
    for wp in w_parts:                             # weights: constant block
        in_specs.append(pl.BlockSpec(wp.shape, lambda i: (0, 0)))
    in_specs.append(pl.BlockSpec((1, G), lambda i: (0, 0)))

    gates = pl.pallas_call(
        functools.partial(proj_kernel, n_parts),
        out_shape=jax.ShapeDtypeStruct((R, G), gate_dtype),
        grid_spec=pltpu.PrefetchScalarGridSpec(
            num_scalar_prefetch=0,
            grid=grid,
            in_specs=in_specs,
            out_specs=pl.BlockSpec((TR, G), lambda i: (i, 0)),
        ),
        compiler_params=_cparams(("parallel",)),
    )(*x_parts, *w_parts, b_cat)
    return gates


# ----------------------------------------------------------------------------
# Kernel 2: fused bidirectional LSTM recurrence.
#   grid = (batch_blocks [parallel], time_blocks [arbitrary, carries state]).
#   fwd consumes time block t of the gates' left column half, bwd consumes the
#   mirrored block nb-1-t of the right column half (pure index_map reversal).
#   One block-diagonal (N,2H)@(2H,8H) recurrent matmul per timestep.
#   Gate column order (host-permuted): [i | f | o | g].
# ----------------------------------------------------------------------------
def bilstm_kernel(TB, H, unroll, gf_ref, gb_ref, whh_ref,
                  hf_out_ref, hb_out_ref, hf_sc, hb_sc, cf_sc, cb_sc):
    @pl.when(pl.program_id(1) == 0)
    def _():
        hf_sc[...] = jnp.zeros_like(hf_sc)
        hb_sc[...] = jnp.zeros_like(hb_sc)
        cf_sc[...] = jnp.zeros_like(cf_sc)
        cb_sc[...] = jnp.zeros_like(cb_sc)

    whh = whh_ref[...]                   # (2H, 8H) blockdiag, loop-invariant
    G3, G4 = 3 * H, 4 * H

    def step(s, carry):
        sb = TB - 1 - s
        h_cat = jnp.concatenate([hf_sc[...], hb_sc[...]], axis=-1)   # (N, 2H)
        rec = jnp.dot(h_cat, whh, preferred_element_type=jnp.float32)  # (N, 8H)

        gates_f = gf_ref[s].astype(jnp.float32) + rec[:, :G4]
        gates_b = gb_ref[sb].astype(jnp.float32) + rec[:, G4:]

        ifo_f = jax.nn.sigmoid(gates_f[:, :G3])
        g_f = jnp.tanh(gates_f[:, G3:])
        ifo_b = jax.nn.sigmoid(gates_b[:, :G3])
        g_b = jnp.tanh(gates_b[:, G3:])

        c_f = ifo_f[:, H:2 * H] * cf_sc[...] + ifo_f[:, :H] * g_f
        c_b = ifo_b[:, H:2 * H] * cb_sc[...] + ifo_b[:, :H] * g_b
        h_f = (ifo_f[:, 2 * H:] * jnp.tanh(c_f)).astype(hf_out_ref.dtype)
        h_b = (ifo_b[:, 2 * H:] * jnp.tanh(c_b)).astype(hb_out_ref.dtype)

        cf_sc[...] = c_f
        cb_sc[...] = c_b
        hf_sc[...] = h_f
        hb_sc[...] = h_b
        hf_out_ref[s] = h_f
        hb_out_ref[sb] = h_b
        return carry

    lax.fori_loop(0, TB, step, 0, unroll=unroll)


def bilstm_recurrence(gates, whh_cat, h_dtype, *, time_block, batch_block=None,
                      unroll=8):
    T, N, G8 = gates.shape
    H = G8 // 8
    G4 = 4 * H
    TB = time_block
    assert T % TB == 0
    nb = T // TB
    NB = batch_block if batch_block is not None else N
    assert N % NB == 0
    nbatch = N // NB
    unroll = max(1, min(unroll, TB))

    hf, hb = pl.pallas_call(
        functools.partial(bilstm_kernel, TB, H, unroll),
        out_shape=[jax.ShapeDtypeStruct((T, N, H), h_dtype),
                   jax.ShapeDtypeStruct((T, N, H), h_dtype)],
        grid_spec=pltpu.PrefetchScalarGridSpec(
            num_scalar_prefetch=0,
            grid=(nbatch, nb),
            in_specs=[
                # fwd: left column half, forward time
                pl.BlockSpec((TB, NB, G4), lambda b, t: (t, b, 0)),
                # bwd: right column half, mirrored time (no flips)
                pl.BlockSpec((TB, NB, G4), lambda b, t: (nb - 1 - t, b, 1)),
                pl.BlockSpec((2 * H, 8 * H), lambda b, t: (0, 0)),
            ],
            out_specs=[
                pl.BlockSpec((TB, NB, H), lambda b, t: (t, b, 0)),
                pl.BlockSpec((TB, NB, H), lambda b, t: (nb - 1 - t, b, 0)),
            ],
            scratch_shapes=[
                pltpu.VMEM((NB, H), h_dtype),       # h fwd
                pltpu.VMEM((NB, H), h_dtype),       # h bwd
                pltpu.VMEM((NB, H), jnp.float32),   # c fwd (kept f32)
                pltpu.VMEM((NB, H), jnp.float32),   # c bwd (kept f32)
            ],
        ),
        compiler_params=_cparams(("parallel", "arbitrary")),
    )(gates, gates, whh_cat)
    return hf, hb


# ----------------------------------------------------------------------------
# Kernel 3: TDSFullyConnectedBlock (FC-ReLU-FC + residual + LayerNorm) fused
# with the out Linear, row-tiled.  No concatenates: weights are pre-split into
# the two 128-lane halves; out-layer columns are padded to a multiple of 128.
# ----------------------------------------------------------------------------
def head_kernel(xf_ref, xb_ref, w1a_ref, w1b_ref, b1_ref,
                w2a_ref, w2b_ref, b2a_ref, b2b_ref,
                ga_ref, gb_ref, ba_ref, bb_ref,
                woa_ref, wob_ref, bo_ref, out_ref):
    xf = xf_ref[...]
    xb = xb_ref[...]

    # FC1 + ReLU (input concat avoided via row-split w1)
    h = (jnp.dot(xf, w1a_ref[...], preferred_element_type=jnp.float32)
         + jnp.dot(xb, w1b_ref[...], preferred_element_type=jnp.float32)
         + b1_ref[...])
    h = jnp.maximum(h, 0.0).astype(w2a_ref.dtype)

    # FC2 + residual, per column half
    ya = (jnp.dot(h, w2a_ref[...], preferred_element_type=jnp.float32)
          + b2a_ref[...] + xf.astype(jnp.float32))
    yb = (jnp.dot(h, w2b_ref[...], preferred_element_type=jnp.float32)
          + b2b_ref[...] + xb.astype(jnp.float32))

    # LayerNorm over the full (2H) feature dim, stats in f32
    d = ya.shape[-1] + yb.shape[-1]
    mean = (jnp.sum(ya, axis=-1, keepdims=True)
            + jnp.sum(yb, axis=-1, keepdims=True)) / d
    var = (jnp.sum((ya - mean) ** 2, axis=-1, keepdims=True)
           + jnp.sum((yb - mean) ** 2, axis=-1, keepdims=True)) / d
    rstd = lax.rsqrt(var + 1e-5)
    za = ((ya - mean) * rstd * ga_ref[...] + ba_ref[...]).astype(woa_ref.dtype)
    zb = ((yb - mean) * rstd * gb_ref[...] + bb_ref[...]).astype(wob_ref.dtype)

    # out Linear (lane-dense padded columns)
    out_ref[...] = (jnp.dot(za, woa_ref[...], preferred_element_type=jnp.float32)
                    + jnp.dot(zb, wob_ref[...], preferred_element_type=jnp.float32)
                    + bo_ref[...])


def head_forward(xf, xb, hw, *, block_rows=512):
    R, H = xf.shape
    Fp = hw["woa"].shape[1]
    TR = min(block_rows, R)
    grid = (pl.cdiv(R, TR),)

    def const(shp):
        return pl.BlockSpec(shp, lambda i: (0, 0))

    out = pl.pallas_call(
        head_kernel,
        out_shape=jax.ShapeDtypeStruct((R, Fp), jnp.float32),
        grid_spec=pltpu.PrefetchScalarGridSpec(
            num_scalar_prefetch=0,
            grid=grid,
            in_specs=[
                pl.BlockSpec((TR, H), lambda i: (i, 0)),
                pl.BlockSpec((TR, H), lambda i: (i, 0)),
                const(hw["w1a"].shape), const(hw["w1b"].shape), const(hw["b1"].shape),
                const(hw["w2a"].shape), const(hw["w2b"].shape),
                const(hw["b2a"].shape), const(hw["b2b"].shape),
                const(hw["ga"].shape), const(hw["gb"].shape),
                const(hw["ba"].shape), const(hw["bb"].shape),
                const(hw["woa"].shape), const(hw["wob"].shape), const(hw["bo"].shape),
            ],
            out_specs=pl.BlockSpec((TR, Fp), lambda i: (i, 0)),
        ),
        compiler_params=_cparams(("parallel",)),
    )(xf, xb, hw["w1a"], hw["w1b"], hw["b1"], hw["w2a"], hw["w2b"],
      hw["b2a"], hw["b2b"], hw["ga"], hw["gb"], hw["ba"], hw["bb"],
      hw["woa"], hw["wob"], hw["bo"])
    return out


# ----------------------------------------------------------------------------
# Host-side weight preparation (gate permutation, direction fusion, padding)
# ----------------------------------------------------------------------------
def _permute_gate_cols(w, H):
    # PyTorch gate column order [i | f | g | o]  ->  kernel order [i | f | o | g]
    return jnp.concatenate([w[..., :2 * H], w[..., 3 * H:], w[..., 2 * H:3 * H]],
                           axis=-1)


def _prepare_kernel_params(params, num_features, compute_dtype):
    kp = {"lstm": []}
    for li, layer in enumerate(params["lstm"]):
        pf, pb = layer["fwd"], layer["bwd"]
        H = pf["w_hh_t"].shape[0]

        wih_f = _permute_gate_cols(pf["w_ih_t"], H)
        wih_b = _permute_gate_cols(pb["w_ih_t"], H)
        w_cat = jnp.concatenate([wih_f, wih_b], axis=1).astype(compute_dtype)
        if li == 0:
            w_parts = (w_cat,)
        else:                                  # split rows: fwd-half / bwd-half inputs
            w_parts = (w_cat[:H], w_cat[H:])

        b_cat = jnp.concatenate([_permute_gate_cols(pf["b"], H),
                                 _permute_gate_cols(pb["b"], H)],
                                axis=1).astype(jnp.float32)

        whh_f = _permute_gate_cols(pf["w_hh_t"], H)
        whh_b = _permute_gate_cols(pb["w_hh_t"], H)
        whh_cat = jnp.zeros((2 * H, 8 * H), jnp.float32)
        whh_cat = whh_cat.at[:H, :4 * H].set(whh_f)
        whh_cat = whh_cat.at[H:, 4 * H:].set(whh_b)

        kp["lstm"].append({"H": H, "w_parts": w_parts, "b_cat": b_cat,
                           "whh_cat": whh_cat.astype(compute_dtype)})

    hp = params["head"]
    H = params["lstm"][-1]["fwd"]["w_hh_t"].shape[0]
    F = num_features
    Fp = ((F + 127) // 128) * 128
    pad = Fp - F
    kp["head"] = {
        "w1a": hp["w1_t"][:H].astype(compute_dtype),
        "w1b": hp["w1_t"][H:].astype(compute_dtype),
        "b1": hp["b1"],
        "w2a": hp["w2_t"][:, :H].astype(compute_dtype),
        "w2b": hp["w2_t"][:, H:].astype(compute_dtype),
        "b2a": hp["b2"][:, :H], "b2b": hp["b2"][:, H:],
        "ga": hp["gamma"][:, :H], "gb": hp["gamma"][:, H:],
        "ba": hp["beta"][:, :H], "bb": hp["beta"][:, H:],
        "woa": jnp.pad(hp["wo_t"][:H], ((0, 0), (0, pad))).astype(compute_dtype),
        "wob": jnp.pad(hp["wo_t"][H:], ((0, 0), (0, pad))).astype(compute_dtype),
        "bo": jnp.pad(hp["bo"], ((0, 0), (0, pad))),
        "F": F,
    }
    return kp


# ----------------------------------------------------------------------------
# Full encoder forward
# ----------------------------------------------------------------------------
def tds_lstm_encoder(inputs, params, *, compute_dtype=jnp.bfloat16,
                     time_block=None, proj_rows=512, head_rows=512,
                     batch_block=None, recurrence_unroll=8):
    """TDSLSTMEncoder forward. inputs: (T, N, F) f32 -> (T, N, F) f32."""
    T, N, F = inputs.shape
    if time_block is None:
        time_block = next(tb for tb in (32, 16, 8, 4, 2, 1) if T % tb == 0)
    assert T % time_block == 0

    kp = _prepare_kernel_params(params, F, compute_dtype)

    # Activations flow as 2-D (T*N, C) parts; for layer > 0 the parts are the
    # fwd/bwd halves, so the (T, N, 2H) concatenate never hits HBM.
    x_parts = [inputs.reshape(T * N, F).astype(compute_dtype)]

    for lp in kp["lstm"]:
        H = lp["H"]
        gates2d = input_projection(x_parts, lp["w_parts"], lp["b_cat"],
                                   compute_dtype, block_rows=proj_rows)
        gates = gates2d.reshape(T, N, 8 * H)
        hf, hb = bilstm_recurrence(gates, lp["whh_cat"], compute_dtype,
                                   time_block=time_block,
                                   batch_block=batch_block,
                                   unroll=recurrence_unroll)
        x_parts = [hf.reshape(T * N, H), hb.reshape(T * N, H)]

    out2d = head_forward(x_parts[0], x_parts[1], kp["head"],
                         block_rows=head_rows)
    out2d = out2d[:, :kp["head"]["F"]]           # drop lane padding
    return out2d.reshape(T, N, -1)


# ----------------------------------------------------------------------------
# Deterministic parameter construction (mirrors nn.LSTM / nn.Linear shapes)
# ----------------------------------------------------------------------------
def _uniform(key, shape, bound):
    return jax.random.uniform(key, shape, jnp.float32, -bound, bound)


def make_params(key, num_features, hidden, num_layers):
    params = {"lstm": [], "head": {}}
    D = 2 * hidden
    k_lstm = 1.0 / np.sqrt(hidden)

    for layer in range(num_layers):
        in_size = num_features if layer == 0 else D
        layer_p = {}
        for direction in ("fwd", "bwd"):
            key, k1, k2, k3, k4 = jax.random.split(key, 5)
            w_ih = _uniform(k1, (4 * hidden, in_size), k_lstm)   # PyTorch layout
            w_hh = _uniform(k2, (4 * hidden, hidden), k_lstm)
            b_ih = _uniform(k3, (4 * hidden,), k_lstm)
            b_hh = _uniform(k4, (4 * hidden,), k_lstm)
            layer_p[direction] = {
                "w_ih_t": w_ih.T,                     # (in, 4H)
                "w_hh_t": w_hh.T,                     # (H, 4H)
                "b": (b_ih + b_hh).reshape(1, -1),    # (1, 4H)
            }
        params["lstm"].append(layer_p)

    key, k1, k2, k3, k4, k5, k6 = jax.random.split(key, 7)
    k_fc = 1.0 / np.sqrt(D)
    params["head"] = {
        "w1_t": _uniform(k1, (D, D), k_fc).T,
        "b1": _uniform(k2, (D,), k_fc).reshape(1, -1),
        "w2_t": _uniform(k3, (D, D), k_fc).T,
        "b2": _uniform(k4, (D,), k_fc).reshape(1, -1),
        "gamma": jnp.ones((1, D), jnp.float32),
        "beta": jnp.zeros((1, D), jnp.float32),
        "wo_t": _uniform(k5, (num_features, D), k_fc).T,   # (D, F)
        "bo": _uniform(k6, (num_features,), k_fc).reshape(1, -1),
    }
    return params


# ----------------------------------------------------------------------------
# Pure-JAX reference (for correctness check) -- PyTorch semantics
# ----------------------------------------------------------------------------
def reference_forward(inputs, params):
    def lstm_dir_ref(x, p):
        T, N, _ = x.shape
        H = p["w_hh_t"].shape[0]
        h = jnp.zeros((N, H), jnp.float32)
        c = jnp.zeros((N, H), jnp.float32)
        outs = []
        for t in range(T):
            gates = x[t] @ p["w_ih_t"] + h @ p["w_hh_t"] + p["b"]
            i = jax.nn.sigmoid(gates[:, :H])
            f = jax.nn.sigmoid(gates[:, H:2 * H])
            g = jnp.tanh(gates[:, 2 * H:3 * H])
            o = jax.nn.sigmoid(gates[:, 3 * H:])
            c = f * c + i * g
            h = o * jnp.tanh(c)
            outs.append(h)
        return jnp.stack(outs, axis=0)

    x = inputs
    for layer in params["lstm"]:
        fwd = lstm_dir_ref(x, layer["fwd"])
        bwd = jnp.flip(lstm_dir_ref(jnp.flip(x, 0), layer["bwd"]), 0)
        x = jnp.concatenate([fwd, bwd], axis=-1)

    hp = params["head"]
    h = jnp.maximum(x @ hp["w1_t"] + hp["b1"], 0.0)
    y = h @ hp["w2_t"] + hp["b2"] + x
    mean = jnp.mean(y, -1, keepdims=True)
    var = jnp.mean((y - mean) ** 2, -1, keepdims=True)
    z = (y - mean) * lax.rsqrt(var + 1e-5) * hp["gamma"] + hp["beta"]
    return z @ hp["wo_t"] + hp["bo"]


# ----------------------------------------------------------------------------
if __name__ == "__main__":
    T, N, F = 8, 2, 16          # (time, batch, num_features)
    HIDDEN, LAYERS = 32, 2      # small lstm_hidden_size / num_lstm_layers

    key = jax.random.PRNGKey(0)
    key, k_in = jax.random.split(key)
    inputs = jax.random.normal(k_in, (T, N, F), jnp.float32)
    params = make_params(key, F, HIDDEN, LAYERS)

    ref = reference_forward(inputs, params)

    # f32 validation path (tight tolerance against the pure-JAX reference)
    out_f32 = jax.block_until_ready(
        tds_lstm_encoder(inputs, params, compute_dtype=jnp.float32))
    assert out_f32.shape == (T, N, F), out_f32.shape
    np.testing.assert_allclose(np.asarray(out_f32), np.asarray(ref),
                               rtol=1e-4, atol=1e-4)

    # bf16 fast path (bf16 MXU operands, f32 accumulation) -- loose tolerance
    out_bf16 = jax.block_until_ready(
        tds_lstm_encoder(inputs, params, compute_dtype=jnp.bfloat16))
    assert out_bf16.shape == (T, N, F), out_bf16.shape
    np.testing.assert_allclose(np.asarray(out_bf16), np.asarray(ref),
                               rtol=1e-1, atol=1e-1)

    print("KERNEL_OK")
</pallas_src>

<mosaic_0001>
module attributes {stable_mosaic.version = 11 : i64} {
  func.func @proj_kernel(%arg0: i32, %arg1: memref<16x16xf32, #tpu.memory_space<vmem>>, %arg2: memref<16x256xf32, #tpu.memory_space<vmem>>, %arg3: memref<1x256xf32, #tpu.memory_space<vmem>>, %arg4: memref<16x256xf32, #tpu.memory_space<vmem>>) attributes {dimension_semantics = [#tpu.dimension_semantics<parallel>], iteration_bounds = array<i64: 1>, scalar_prefetch = 0 : i64, scratch_operands = 0 : i64, tpu.core_type = #tpu.core_type<tc>, window_params = [{transform_indices = @transform_0, window_bounds = array<i64: 16, 16>}, {pipeline_mode = #tpu.pipeline_mode<synchronous>, transform_indices = @transform_1, window_bounds = array<i64: 16, 256>}, {pipeline_mode = #tpu.pipeline_mode<synchronous>, transform_indices = @transform_2, window_bounds = array<i64: 1, 256>}, {transform_indices = @transform_3, window_bounds = array<i64: 16, 256>}]} {
    %c0 = arith.constant 0 : index
    %c0_0 = arith.constant 0 : index
    %0 = vector.load %arg3[%c0, %c0_0] : memref<1x256xf32, #tpu.memory_space<vmem>>, vector<1x256xf32>
    %c0_1 = arith.constant 0 : index
    %c0_2 = arith.constant 0 : index
    %1 = vector.load %arg1[%c0_1, %c0_2] : memref<16x16xf32, #tpu.memory_space<vmem>>, vector<16x16xf32>
    %c0_3 = arith.constant 0 : index
    %c0_4 = arith.constant 0 : index
    %2 = vector.load %arg2[%c0_3, %c0_4] : memref<16x256xf32, #tpu.memory_space<vmem>>, vector<16x256xf32>
    %cst = arith.constant dense<0.000000e+00> : vector<16x256xf32>
    %3 = tpu.matmul %1, %2, %cst {dimension_numbers = #tpu.dot_dimension_numbers<[1], [0], [0], [1], [0, 0, 1, 1], [], []>} : vector<16x16xf32>, vector<16x256xf32>, vector<16x256xf32> -> vector<16x256xf32>
    %4 = vector.broadcast %0 : vector<1x256xf32> to vector<16x256xf32>
    %5 = arith.addf %4, %3 : vector<16x256xf32>
    %c0_5 = arith.constant 0 : index
    %c0_6 = arith.constant 0 : index
    %6 = vector.load %arg4[%c0_5, %c0_6] : memref<16x256xf32, #tpu.memory_space<vmem>>, vector<16x256xf32>
    tpu.vector_store %arg4[%c0_5, %c0_6], %5 {strides = array<i32>} : memref<16x256xf32, #tpu.memory_space<vmem>>, vector<16x256xf32>,
    return
  }
  func.func @transform_0(%arg0: i32) -> (i32, i32) {
    %c0_i32 = arith.constant 0 : i32
    %c0_i32_0 = arith.constant 0 : i32
    return %arg0, %c0_i32 : i32, i32
  }
  func.func @transform_1(%arg0: i32) -> (i32, i32) {
    %c0_i32 = arith.constant 0 : i32
    %c0_i32_0 = arith.constant 0 : i32
    %c0_i32_1 = arith.constant 0 : i32
    return %c0_i32, %c0_i32_0 : i32, i32
  }
  func.func @transform_2(%arg0: i32) -> (i32, i32) {
    %c0_i32 = arith.constant 0 : i32
    %c0_i32_0 = arith.constant 0 : i32
    %c0_i32_1 = arith.constant 0 : i32
    return %c0_i32, %c0_i32_0 : i32, i32
  }
  func.func @transform_3(%arg0: i32) -> (i32, i32) {
    %c0_i32 = arith.constant 0 : i32
    %c0_i32_0 = arith.constant 0 : i32
    return %arg0, %c0_i32 : i32, i32
  }
}

</mosaic_0001>

<llo_original>
// kernel: tpu_custom_call.1
$region0: #{tpu_custom_call.1}
  #allocation0 [shape = 'u32[]', space=smem, size = 0x4, offset = 0x4, fixed_abs, tag = 'smem constant byte address 0x4 - core index']
  #allocation1 [shape = 'u32[144,128]{1,0:T(1,128)}', space=vmem, size = 0x12000, scoped, tag = 'internal scratch']
  %s0 = inlined_call_operand.hbm [shape: f32[16,16], index: 0, kind: input, shape index: {}]
  %s1 = inlined_call_operand.hbm [shape: f32[16,256], index: 1, kind: input, shape index: {}]
  %s2 = inlined_call_operand.vmem [shape: f32[1,256], index: 2, kind: input, shape index: {}]
  %s3 = inlined_call_operand.hbm [shape: f32[16,256], index: 3, kind: output, shape index: {}]
  %s4 = sld [smem:[#allocation0]]
  $region30: #{tpu_custom_call.1} parent=0
    _
  %s6 = ssub.s32 1, %s4
  %s7 = scalar_select 0, %s6, %s4
  $region1: #{tpu_custom_call.1} parent=0
    #allocation2 [shape = 'u8[8192]{0}', space=vmem, size = 0x2000, scoped, tag = 'input window, operand 0, single buffered']
    #allocation3 [shape = 's32[1]{0}', space=sflag, size = 0x4, scoped, tag = 'scoped memory for tpu_custom_call.1']
    #allocation4 [shape = 's32[1]{0}', space=sflag, size = 0x4, scoped, tag = 'scoped memory for tpu_custom_call.1']
    #allocation5 [shape = 'u8[16384]{0}', space=vmem, size = 0x4000, scoped, tag = 'input window, operand 1, single buffered']
    #allocation6 [shape = 's32[1]{0}', space=sflag, size = 0x4, scoped, tag = 'scoped memory for tpu_custom_call.1']
    #allocation7 [shape = 'u8[16384]{0}', space=vmem, size = 0x4000, scoped, tag = 'output window, operand 0, single buffered']
    %8 = vsyncpa [#allocation3], 0
    %9 = vsyncpa [#allocation6], 0
    %10 = vsyncpa [#allocation4], 0
    // Predicated region
    $region2: #{tpu_custom_call.1} parent=1 // pred_check
      _
    $region3: #{tpu_custom_call.1} parent=1 // pred_check_branch
      %12 = sbr.rel (0) target = $region5
    $region4: #{tpu_custom_call.1} parent=1 // pred_region
      %s14 = ssub.s32 256, 256
      %15 = vsyncadd [#allocation3], %s14
      %s16 = sshll.u32 [#allocation2], 4
      %s17 = int_to_ptr.vmem [resolvable:$true] %s16
      %22 = dma.hbm_to_vmem [thread:$0]  %s0, 256, %s17, [#allocation3], 128, 128, 8
    $region5: #{tpu_custom_call.1} parent=1 // pred_fallthru
      _
    // Predicated region
    $region6: #{tpu_custom_call.1} parent=1 // pred_check
      _
    $region7: #{tpu_custom_call.1} parent=1 // pred_check_branch
      %24 = sbr.rel (0) target = $region9
    $region8: #{tpu_custom_call.1} parent=1 // pred_region
      %s26 = ssub.s32 512, 512
      %27 = vsyncadd [#allocation6], %s26
      %s28 = sshll.u32 [#allocation5], 4
      %s29 = int_to_ptr.vmem [resolvable:$true] %s28
      %34 = dma.hbm_to_vmem [thread:$0]  %s1, 512, %s29, [#allocation6], 256, 256, 16
    $region9: #{tpu_custom_call.1} parent=1 // pred_fallthru
      _
    // Predicated region
    $region10: #{tpu_custom_call.1} parent=1 // pred_check
      _
    $region11: #{tpu_custom_call.1} parent=1 // pred_check_branch
      %36 = sbr.rel (0) target = $region13
    $region12: #{tpu_custom_call.1} parent=1 // pred_region
      _
    $region13: #{tpu_custom_call.1} parent=1 // pred_fallthru
      _
    // Predicated region
    $region14: #{tpu_custom_call.1} parent=1 // pred_check
      _
    $region15: #{tpu_custom_call.1} parent=1 // pred_check_branch
      %38 = sbr.rel (0) target = $region17
    $region16: #{tpu_custom_call.1} parent=1 // pred_region
      %39 = dma.done [#allocation3], 256
    $region17: #{tpu_custom_call.1} parent=1 // pred_fallthru
      _
    // Predicated region
    $region18: #{tpu_custom_call.1} parent=1 // pred_check
      _
    $region19: #{tpu_custom_call.1} parent=1 // pred_check_branch
      %41 = sbr.rel (0) target = $region21
    $region20: #{tpu_custom_call.1} parent=1 // pred_region
      %42 = dma.done [#allocation6], 512
    $region21: #{tpu_custom_call.1} parent=1 // pred_fallthru
      _
    %v43 = vld [vmem:[%s2] sm:$0x3]
    %v44 = vld [vmem:[#allocation2] sm:$0xff]
    %v45 = vld [vmem:[#allocation2 + $0x8] sm:$0xff]
    %v46 = vld [vmem:[#allocation5] sm:$0xff]
    %v47 = vld [vmem:[#allocation5 + $0x8] sm:$0xff]
    %v48 = vld [vmem:[#allocation5 + $0x10] sm:$0xff]
    %v49 = vld [vmem:[#allocation5 + $0x18] sm:$0xff]
    %vm50 = vcmask 130048
    %v52 = vsel %vm50, %v44, 0
    %v55 = vsel %vm50, %v45, 0
    %57 = vmatprep.subr.mxu0 0.0
    %58 = vmatpush1.msra.mxu0 0.0
    %59 = vmatprep.subr.mxu0 0.0
    %60 = vmatpush1.msra.mxu0 0.0
    %61 = vmatprep.subr.mxu0 0.0
    %62 = vmatpush1.msra.mxu0 0.0
    %63 = vmatprep.subr.mxu0 0.0
    %64 = vmatpush1.msra.mxu0 0.0
    %65 = vmatprep.subr.mxu0 0.0
    %66 = vmatpush1.msra.mxu0 0.0
    %67 = vmatprep.subr.mxu0 0.0
    %68 = vmatpush1.msra.mxu0 0.0
    %69 = vmatprep.subr.mxu0 0.0
    %70 = vmatpush1.msra.mxu0 0.0
    %71 = vmatprep.subr.mxu0 0.0
    %72 = vmatpush1.msra.mxu0 0.0
    %73 = vmatprep.subr.mxu0 0.0
    %74 = vmatpush1.msra.mxu0 0.0
    %75 = vmatprep.subr.mxu0 0.0
    %76 = vmatpush1.msra.mxu0 0.0
    %77 = vmatprep.subr.mxu0 0.0
    %78 = vmatpush1.msra.mxu0 0.0
    %79 = vmatprep.subr.mxu0 0.0
    %80 = vmatpush1.msra.mxu0 0.0
    %81 = vmatprep.subr.mxu0 0.0
    %82 = vmatpush1.msra.mxu0 0.0
    %83 = vmatprep.subr.mxu0 0.0
    %84 = vmatpush1.msra.mxu0 0.0
    %85 = vmatprep.subr.mxu0 %v49
    %86 = vmatpush1.msra.mxu0 %v48
    %87 = vmatprep.subr.mxu0 %v47
    %88 = vmatpush1.msra.mxu0 %v46
    %89 = vmatprep.subr.mxu0 0.0
    %90 = vmatpush2.msra.mxu0 0.0
    %91 = vmatprep.subr.mxu0 0.0
    %92 = vmatpush2.msra.mxu0 0.0
    %93 = vmatprep.subr.mxu0 0.0
    %94 = vmatpush2.msra.mxu0 0.0
    %95 = vmatprep.subr.mxu0 0.0
    %96 = vmatpush2.msra.mxu0 0.0
    %97 = vmatprep.subr.mxu0 0.0
    %98 = vmatpush2.msra.mxu0 0.0
    %99 = vmatprep.subr.mxu0 0.0
    %100 = vmatpush2.msra.mxu0 0.0
    %101 = vmatprep.subr.mxu0 0.0
    %102 = vmatpush2.msra.mxu0 0.0
    %103 = vmatprep.subr.mxu0 0.0
    %104 = vmatpush2.msra.mxu0 0.0
    %105 = vmatprep.subr.mxu0 0.0
    %106 = vmatpush2.msra.mxu0 0.0
    %107 = vmatprep.subr.mxu0 0.0
    %108 = vmatpush2.msra.mxu0 0.0
    %109 = vmatprep.subr.mxu0 0.0
    %110 = vmatpush2.msra.mxu0 0.0
    %111 = vmatprep.subr.mxu0 0.0
    %112 = vmatpush2.msra.mxu0 0.0
    %113 = vmatprep.subr.mxu0 0.0
    %114 = vmatpush2.msra.mxu0 0.0
    %115 = vmatprep.subr.mxu0 0.0
    %116 = vmatpush2.msra.mxu0 0.0
    %117 = vmatprep.subr.mxu0 0.0
    %118 = vmatpush2.msra.mxu0 0.0
    %119 = vmatprep.subr.mxu0 0.0
    %120 = vmatpush2.msra.mxu0 0.0
    %121 = vmatprep.mubr.f32.mxu0 0.0
    %122 = vmatmul.mubr.f32.gmra.mxu0 %v52
    %v123 = vpop.f32.mrf.mxu0
    %v124 = vadd.f32 0.0, %v123
    %v125 = vpop.f32.mrf.mxu0
    %v126 = vadd.f32 0.0, %v125
    %127 = vmatprep.mubr.f32.mxu0 0.0
    %128 = vmatmul.mubr.f32.gmra.mxu0 %v55
    %v129 = vpop.f32.mrf.mxu0
    %v130 = vadd.f32 0.0, %v129
    %v131 = vpop.f32.mrf.mxu0
    %v132 = vadd.f32 0.0, %v131
    %133 = vdwg.mxu0
    %v135 = vlaneseq
    %v136 = vshrl.u32 %v135, 7
    %v137 = vsub.s32 0, %v136
    %v138 = vrot.slane %v43, %v137
    %v139 = vlaneseq
    %v140 = vshrl.u32 %v139, 7
    %v141 = vsub.s32 1, %v140
    %v142 = vrot.slane %v43, %v141
    %v145 = vadd.f32 %v138, %v124
    %v146 = vadd.f32 %v142, %v126
    %v147 = vadd.f32 %v138, %v130
    %v148 = vadd.f32 %v142, %v132
    %149 = vst [vmem:[#allocation7] sm:$0xff] %v145
    %150 = vst [vmem:[#allocation7 + $0x8] sm:$0xff] %v146
    %151 = vst [vmem:[#allocation7 + $0x10] sm:$0xff] %v147
    %152 = vst [vmem:[#allocation7 + $0x18] sm:$0xff] %v148
    // Predicated region
    $region22: #{tpu_custom_call.1} parent=1 // pred_check
      _
    $region23: #{tpu_custom_call.1} parent=1 // pred_check_branch
      %154 = sbr.rel (0) target = $region25
    $region24: #{tpu_custom_call.1} parent=1 // pred_region
      %s156 = ssub.s32 512, 512
      %157 = vsyncadd [#allocation4], %s156
      %s158 = sshll.u32 [#allocation7], 4
      %s159 = int_to_ptr.vmem [resolvable:$true] %s158
      %164 = dma.vmem_to_hbm [thread:$0]  %s159, 512, %s3, [#allocation4], 256, 256, 16
    $region25: #{tpu_custom_call.1} parent=1 // pred_fallthru
      _
    // Predicated region
    $region26: #{tpu_custom_call.1} parent=1 // pred_check
      _
    $region27: #{tpu_custom_call.1} parent=1 // pred_check_branch
      %166 = sbr.rel (0) target = $region29
    $region28: #{tpu_custom_call.1} parent=1 // pred_region
      %167 = dma.done [#allocation4], 512
    $region29: #{tpu_custom_call.1} parent=1 // pred_fallthru
      _
    %168 = vsyncpa [#allocation3], 1
    %169 = vsyncpa [#allocation6], 1
    %170 = vsyncpa [#allocation4], 1

</llo_original>
